<compile_context>
chip_gen: v5e
topology: v5e:2x2
jax: 0.10.0
libtpu: 0.0.40
codegen_flags: <defaults>
</compile_context>

<pallas_src>
import jax
import jax.numpy as jnp
from jax.experimental import pallas as pl
from jax.experimental.pallas import tpu as pltpu


def _round_up(x, m):
    return (x + m - 1) // m * m


# ----------------------------------------------------------------------------
# Pallas kernel: tiled GEMM, f32 accumulator, bias folded into the init.
# ----------------------------------------------------------------------------
def _upsample_gemm_kernel(x_ref, w_ref, b_ref, o_ref, acc_ref):
    k = pl.program_id(2)

    @pl.when(k == 0)
    def _init():
        # Bias folded into accumulator init -- done once per (i, j) tile.
        acc_ref[...] = jnp.broadcast_to(
            b_ref[...].astype(jnp.float32), acc_ref.shape)

    acc_ref[...] += jnp.dot(x_ref[...], w_ref[...],
                            preferred_element_type=jnp.float32)

    @pl.when(k == pl.num_programs(2) - 1)
    def _finalize():
        o_ref[...] = acc_ref[...].astype(o_ref.dtype)


def _upsample_gemm(x2d, w2d, bias_row, *, use_bf16_inputs=True):
    """(M, K) @ (K, N) + bias_row -> (M, N) float32 via a tiled Pallas GEMM."""
    M, K = x2d.shape
    K2, N = w2d.shape
    assert K == K2 and bias_row.shape == (N,)

    # Tile sizes: lane-dense output (>=128), MXU-friendly (512 is a multiple
    # of 256 for v6e/v7x, of 128 for v5e), small enough that double-buffered
    # tiles stay well under v7x's 64 MiB VMEM per TensorCore.
    tm = min(256, _round_up(M, 8))
    tn = min(512, _round_up(N, 128))
    tk = min(512, _round_up(K, 128))

    M_pad = _round_up(M, tm)
    N_pad = _round_up(N, tn)
    K_pad = _round_up(K, tk)

    in_dtype = jnp.bfloat16 if use_bf16_inputs else jnp.float32
    in_bytes = 2 if use_bf16_inputs else 4

    x_p = jnp.pad(x2d, ((0, M_pad - M), (0, K_pad - K))).astype(in_dtype)
    w_p = jnp.pad(w2d, ((0, K_pad - K), (0, N_pad - N))).astype(in_dtype)
    b_p = jnp.pad(bias_row, (0, N_pad - N)).astype(jnp.float32).reshape(1, N_pad)

    grid = (M_pad // tm, N_pad // tn, K_pad // tk)

    # Double-buffered inputs/outputs + f32 accumulator scratch, with margin.
    vmem_bytes = (2 * (tm * tk * in_bytes + tk * tn * in_bytes
                       + tn * 4 + tm * tn * 4)
                  + tm * tn * 4)
    vmem_limit = int(min(max(2 * vmem_bytes, 16 << 20), 48 << 20))

    cost = pl.CostEstimate(
        flops=2 * M_pad * K_pad * N_pad,
        transcendentals=0,
        bytes_accessed=(M_pad * K_pad + K_pad * N_pad) * in_bytes
                       + (M_pad * N_pad + N_pad) * 4,
    )

    out = pl.pallas_call(
        _upsample_gemm_kernel,
        out_shape=jax.ShapeDtypeStruct((M_pad, N_pad), jnp.float32),
        grid_spec=pltpu.PrefetchScalarGridSpec(
            num_scalar_prefetch=0,
            grid=grid,
            in_specs=[
                pl.BlockSpec((tm, tk), lambda i, j, k: (i, k)),
                pl.BlockSpec((tk, tn), lambda i, j, k: (k, j)),
                pl.BlockSpec((1, tn), lambda i, j, k: (0, j)),
            ],
            out_specs=pl.BlockSpec((tm, tn), lambda i, j, k: (i, j)),
            scratch_shapes=[pltpu.VMEM((tm, tn), jnp.float32)],
        ),
        compiler_params=pltpu.CompilerParams(
            dimension_semantics=("parallel", "parallel", "arbitrary"),
            vmem_limit_bytes=vmem_limit,
        ),
        cost_estimate=cost,
    )(x_p, w_p, b_p)

    return out[:M, :N]


# ----------------------------------------------------------------------------
# moduleNet_G forward
# ----------------------------------------------------------------------------
def module_net_g_forward(seq_data, weight, bias, scale, *, is_train=True,
                         key=None, use_bf16_inputs=True):
    """seq_data: (B, C, T) f32.  weight: (Cin, Cout, scale) (ConvTranspose1d
    layout).  bias: (Cout,).  Returns NCT (B, Cout, (T//scale)*scale)."""
    B, C, T = seq_data.shape

    if is_train:
        # framewise[:, :, i] = seq_data[:, :, i*scale + n_i],  n_i ~ U{0..scale-1}
        n_blocks = T // scale
        if key is None:
            key = jax.random.PRNGKey(0)   # NOTE: deterministic fallback
        n = jax.random.randint(key, (n_blocks,), 0, scale)
        idx = jnp.arange(n_blocks) * scale + n
        framewise = jnp.take(seq_data, idx, axis=2)          # (B, C, T//scale)
    else:
        framewise = seq_data

    T_ds = framewise.shape[2]
    Cin, Cout, K = weight.shape  # K == scale

    # GEMM operands.  Weight columns are k-major (col = k*Cout + co) so the
    # GEMM result reshapes directly to NTC (B, T_ds*K, Cout) with no 4-D
    # shuffle; only one final transpose back to the module's NCT layout.
    x2d = jnp.transpose(framewise, (0, 2, 1)).reshape(B * T_ds, Cin)
    w2d = jnp.transpose(weight, (0, 2, 1)).reshape(Cin, K * Cout)
    b_row = jnp.tile(bias, K)                                # bias[col % Cout]

    out2d = _upsample_gemm(x2d, w2d, b_row, use_bf16_inputs=use_bf16_inputs)

    out_ntc = out2d.reshape(B, T_ds * K, Cout)               # (B, T_out, Cout)
    return jnp.transpose(out_ntc, (0, 2, 1))                 # NCT


# ----------------------------------------------------------------------------
# Deterministic parameter init (ConvTranspose1d(hidden, hidden, scale, scale))
# ----------------------------------------------------------------------------
def init_params(hidden_size, scale, key):
    kw, kb = jax.random.split(key)
    fan = hidden_size * scale
    bound = 1.0 / jnp.sqrt(fan)
    weight = jax.random.uniform(kw, (hidden_size, hidden_size, scale),
                                jnp.float32, -bound, bound)
    bias = jax.random.uniform(kb, (hidden_size,), jnp.float32, -bound, bound)
    return weight, bias


def _reference_forward(framewise, weight, bias):
    """Pure-JAX reference: ConvTranspose1d with stride == kernel, NCT out."""
    B, Cin, T_ds = framewise.shape
    _, Cout, K = weight.shape
    out = jnp.einsum('bci,cok->boik', framewise, weight,
                     preferred_element_type=jnp.float32)
    out = out + bias[None, :, None, None]
    return out.reshape(B, Cout, T_ds * K)


if __name__ == "__main__":
    hidden_size = 32
    scale = 2
    batch = 2
    seq_len = 16  # divisible by scale

    root = jax.random.PRNGKey(0)
    k_data, k_param, k_sample = jax.random.split(root, 3)

    seq_data = jax.random.normal(k_data, (batch, hidden_size, seq_len),
                                 jnp.float32)
    weight, bias = init_params(hidden_size, scale, k_param)

    out = module_net_g_forward(seq_data, weight, bias, scale,
                               is_train=True, key=k_sample)
    out = jax.block_until_ready(out)

    assert out.shape == (batch, hidden_size, (seq_len // scale) * scale)
    assert out.dtype == jnp.float32

    # Reference check (re-derive the same sampled frames with the same key).
    n_blocks = seq_len // scale
    n = jax.random.randint(k_sample, (n_blocks,), 0, scale)
    idx = jnp.arange(n_blocks) * scale + n
    framewise = jnp.take(seq_data, idx, axis=2)
    ref = _reference_forward(framewise, weight, bias)
    assert jnp.allclose(out, ref, atol=2e-2, rtol=2e-2), \
        float(jnp.max(jnp.abs(out - ref)))

    print("KERNEL_OK")
</pallas_src>

<mosaic_0001>
module attributes {stable_mosaic.version = 11 : i64} {
  func.func @_upsample_gemm_kernel(%arg0: i32, %arg1: i32, %arg2: i32, %arg3: memref<16x128xbf16, #tpu.memory_space<vmem>>, %arg4: memref<128x128xbf16, #tpu.memory_space<vmem>>, %arg5: memref<1x128xf32, #tpu.memory_space<vmem>>, %arg6: memref<16x128xf32, #tpu.memory_space<vmem>>, %arg7: memref<16x128xf32, #tpu.memory_space<vmem>>) attributes {dimension_semantics = [#tpu.dimension_semantics<parallel>, #tpu.dimension_semantics<parallel>, #tpu.dimension_semantics<arbitrary>], iteration_bounds = array<i64: 1, 1, 1>, scalar_prefetch = 0 : i64, scratch_operands = 1 : i64, tpu.core_type = #tpu.core_type<tc>, window_params = [{transform_indices = @transform_0, window_bounds = array<i64: 16, 128>}, {transform_indices = @transform_1, window_bounds = array<i64: 128, 128>}, {transform_indices = @transform_2, window_bounds = array<i64: 1, 128>}, {transform_indices = @transform_3, window_bounds = array<i64: 16, 128>}]} {
    %c0_i32 = arith.constant 0 : i32
    %0 = arith.cmpi eq, %arg2, %c0_i32 : i32
    %1 = arith.extui %0 : i1 to i32
    %c0_i32_0 = arith.constant 0 : i32
    %2 = arith.cmpi ne, %1, %c0_i32_0 : i32
    scf.if %2 {
      %c0_10 = arith.constant 0 : index
      %c0_11 = arith.constant 0 : index
      %12 = vector.load %arg5[%c0_10, %c0_11] : memref<1x128xf32, #tpu.memory_space<vmem>>, vector<1x128xf32>
      %13 = vector.shape_cast %12 : vector<1x128xf32> to vector<1x128xf32>
      %14 = vector.broadcast %13 : vector<1x128xf32> to vector<16x128xf32>
      %c0_12 = arith.constant 0 : index
      %c0_13 = arith.constant 0 : index
      %15 = vector.load %arg7[%c0_12, %c0_13] : memref<16x128xf32, #tpu.memory_space<vmem>>, vector<16x128xf32>
      tpu.vector_store %arg7[%c0_12, %c0_13], %14 {strides = array<i32>} : memref<16x128xf32, #tpu.memory_space<vmem>>, vector<16x128xf32>,
    } else {
    }
    %c0 = arith.constant 0 : index
    %c0_1 = arith.constant 0 : index
    %3 = vector.load %arg7[%c0, %c0_1] : memref<16x128xf32, #tpu.memory_space<vmem>>, vector<16x128xf32>
    %c0_2 = arith.constant 0 : index
    %c0_3 = arith.constant 0 : index
    %4 = vector.load %arg3[%c0_2, %c0_3] : memref<16x128xbf16, #tpu.memory_space<vmem>>, vector<16x128xbf16>
    %c0_4 = arith.constant 0 : index
    %c0_5 = arith.constant 0 : index
    %5 = vector.load %arg4[%c0_4, %c0_5] : memref<128x128xbf16, #tpu.memory_space<vmem>>, vector<128x128xbf16>
    %cst = arith.constant dense<0.000000e+00> : vector<16x128xf32>
    %6 = tpu.matmul %4, %5, %cst {dimension_numbers = #tpu.dot_dimension_numbers<[1], [0], [0], [1], [0, 0, 1, 1], [], []>} : vector<16x128xbf16>, vector<128x128xbf16>, vector<16x128xf32> -> vector<16x128xf32>
    %7 = arith.addf %3, %6 : vector<16x128xf32>
    %c0_6 = arith.constant 0 : index
    %c0_7 = arith.constant 0 : index
    %8 = vector.load %arg7[%c0_6, %c0_7] : memref<16x128xf32, #tpu.memory_space<vmem>>, vector<16x128xf32>
    tpu.vector_store %arg7[%c0_6, %c0_7], %7 {strides = array<i32>} : memref<16x128xf32, #tpu.memory_space<vmem>>, vector<16x128xf32>,
    %c0_i32_8 = arith.constant 0 : i32
    %9 = arith.cmpi eq, %arg2, %c0_i32_8 : i32
    %10 = arith.extui %9 : i1 to i32
    %c0_i32_9 = arith.constant 0 : i32
    %11 = arith.cmpi ne, %10, %c0_i32_9 : i32
    scf.if %11 {
      %c0_10 = arith.constant 0 : index
      %c0_11 = arith.constant 0 : index
      %12 = vector.load %arg7[%c0_10, %c0_11] : memref<16x128xf32, #tpu.memory_space<vmem>>, vector<16x128xf32>
      %c0_12 = arith.constant 0 : index
      %c0_13 = arith.constant 0 : index
      %13 = vector.load %arg6[%c0_12, %c0_13] : memref<16x128xf32, #tpu.memory_space<vmem>>, vector<16x128xf32>
      tpu.vector_store %arg6[%c0_12, %c0_13], %12 {strides = array<i32>} : memref<16x128xf32, #tpu.memory_space<vmem>>, vector<16x128xf32>,
    } else {
    }
    return
  }
  func.func @transform_0(%arg0: i32, %arg1: i32, %arg2: i32) -> (i32, i32) {
    %c0_i32 = arith.constant 0 : i32
    return %arg0, %arg2 : i32, i32
  }
  func.func @transform_1(%arg0: i32, %arg1: i32, %arg2: i32) -> (i32, i32) {
    %c0_i32 = arith.constant 0 : i32
    return %arg2, %arg1 : i32, i32
  }
  func.func @transform_2(%arg0: i32, %arg1: i32, %arg2: i32) -> (i32, i32) {
    %c0_i32 = arith.constant 0 : i32
    %c0_i32_0 = arith.constant 0 : i32
    return %c0_i32, %arg1 : i32, i32
  }
  func.func @transform_3(%arg0: i32, %arg1: i32, %arg2: i32) -> (i32, i32) {
    %c0_i32 = arith.constant 0 : i32
    return %arg0, %arg1 : i32, i32
  }
}

</mosaic_0001>

<llo_original>
// kernel: tpu_custom_call.1
$region0: #{tpu_custom_call.1}
  #allocation0 [shape = 'u32[]', space=smem, size = 0x4, offset = 0x4, fixed_abs, tag = 'smem constant byte address 0x4 - core index']
  #allocation1 [shape = 'u32[72,128]{1,0:T(1,128)}', space=vmem, size = 0x9000, scoped, tag = 'internal scratch']
  #allocation2 [shape = 'f32[16,128]{1,0:T(8,128)}', space=vmem, size = 0x2000, scoped, tag = 'scratch operand']
  %s0 = inlined_call_operand.hbm [shape: bf16[16,128], index: 0, kind: input, shape index: {}]
  %s1 = inlined_call_operand.hbm [shape: bf16[128,128], index: 1, kind: input, shape index: {}]
  %s2 = inlined_call_operand.vmem [shape: f32[1,128], index: 2, kind: input, shape index: {}]
  %s3 = inlined_call_operand.hbm [shape: f32[16,128], index: 3, kind: output, shape index: {}]
  %s4 = sld [smem:[#allocation0]]
  $region38: #{tpu_custom_call.1} parent=0
    _
  %s6 = ssub.s32 1, %s4
  %s7 = scalar_select 0, %s6, %s4
  $region1: #{tpu_custom_call.1} parent=0
    #allocation3 [shape = 'u8[4096]{0}', space=vmem, size = 0x1000, scoped, tag = 'input window, operand 0, single buffered']
    #allocation4 [shape = 's32[1]{0}', space=sflag, size = 0x4, scoped, tag = 'scoped memory for tpu_custom_call.1']
    #allocation5 [shape = 's32[1]{0}', space=sflag, size = 0x4, scoped, tag = 'scoped memory for tpu_custom_call.1']
    #allocation6 [shape = 'u8[32768]{0}', space=vmem, size = 0x8000, scoped, tag = 'input window, operand 1, single buffered']
    #allocation7 [shape = 's32[1]{0}', space=sflag, size = 0x4, scoped, tag = 'scoped memory for tpu_custom_call.1']
    #allocation8 [shape = 'u8[8192]{0}', space=vmem, size = 0x2000, scoped, tag = 'output window, operand 0, single buffered']
    %8 = vsyncpa [#allocation4], 0
    %9 = vsyncpa [#allocation7], 0
    %10 = vsyncpa [#allocation5], 0
    // Predicated region
    $region2: #{tpu_custom_call.1} parent=1 // pred_check
      _
    $region3: #{tpu_custom_call.1} parent=1 // pred_check_branch
      %12 = sbr.rel (0) target = $region5
    $region4: #{tpu_custom_call.1} parent=1 // pred_region
      %14 = vsyncadd [#allocation4], 0
      %s15 = sshll.u32 %s0, 4
      %s16 = int_to_ptr.hbm [resolvable:$true] %s15
      %s17 = sshll.u32 [#allocation3], 4
      %s18 = int_to_ptr.vmem [resolvable:$true] %s17
      %23 = dma.hbm_to_vmem [thread:$0]  %s16, 128, %s18, [#allocation4], 64, 64, 4
    $region5: #{tpu_custom_call.1} parent=1 // pred_fallthru
      _
    // Predicated region
    $region6: #{tpu_custom_call.1} parent=1 // pred_check
      _
    $region7: #{tpu_custom_call.1} parent=1 // pred_check_branch
      %25 = sbr.rel (0) target = $region9
    $region8: #{tpu_custom_call.1} parent=1 // pred_region
      %27 = vsyncadd [#allocation7], 0
      %s28 = sshll.u32 %s1, 4
      %s29 = int_to_ptr.hbm [resolvable:$true] %s28
      %s30 = sshll.u32 [#allocation6], 4
      %s31 = int_to_ptr.vmem [resolvable:$true] %s30
      %36 = dma.hbm_to_vmem [thread:$0]  %s29, 1024, %s31, [#allocation7], 64, 64, 4
    $region9: #{tpu_custom_call.1} parent=1 // pred_fallthru
      _
    // Predicated region
    $region10: #{tpu_custom_call.1} parent=1 // pred_check
      _
    $region11: #{tpu_custom_call.1} parent=1 // pred_check_branch
      %38 = sbr.rel (0) target = $region13
    $region12: #{tpu_custom_call.1} parent=1 // pred_region
      _
    $region13: #{tpu_custom_call.1} parent=1 // pred_fallthru
      _
    // Predicated region
    $region14: #{tpu_custom_call.1} parent=1 // pred_check
      _
    $region15: #{tpu_custom_call.1} parent=1 // pred_check_branch
      %40 = sbr.rel (0) target = $region17
    $region16: #{tpu_custom_call.1} parent=1 // pred_region
      %42 = dma.done [#allocation4], 128
    $region17: #{tpu_custom_call.1} parent=1 // pred_fallthru
      _
    // Predicated region
    $region18: #{tpu_custom_call.1} parent=1 // pred_check
      _
    $region19: #{tpu_custom_call.1} parent=1 // pred_check_branch
      %44 = sbr.rel (0) target = $region21
    $region20: #{tpu_custom_call.1} parent=1 // pred_region
      %46 = dma.done [#allocation7], 1024
    $region21: #{tpu_custom_call.1} parent=1 // pred_fallthru
      _
    %p47 = scmp.eq.s32.totalorder 0, 0
    // Predicated region
    $region22: #{tpu_custom_call.1} parent=1 // pred_check
      %p48 = pneg %p47
    $region23: #{tpu_custom_call.1} parent=1 // pred_check_branch
      %50 = sbr.rel (%p48) target = $region25
    $region24: #{tpu_custom_call.1} parent=1 // pred_region
      %v51 = vld [vmem:[%s2] sm:$0x1]
      %v53 = vperm.slane %v51, 0
      %55 = vst [vmem:[#allocation2] sm:$0xff] %v53
      %56 = vst [vmem:[#allocation2 + $0x8] sm:$0xff] %v53
    $region25: #{tpu_custom_call.1} parent=1 // pred_fallthru
      _
    %v57 = vld [vmem:[#allocation2] sm:$0xff]
    %v58 = vld [vmem:[#allocation2 + $0x8] sm:$0xff]
    %v59 = vld [vmem:[#allocation3] sm:$0xf]
    %v60 = vld [vmem:[#allocation3 + $0x4] sm:$0xf]
    %v61 = vld [vmem:[#allocation6] sm:$0xf]
    %v62 = vld [vmem:[#allocation6 + $0x4] sm:$0xf]
    %v63 = vld [vmem:[#allocation6 + $0x8] sm:$0xf]
    %v64 = vld [vmem:[#allocation6 + $0xc] sm:$0xf]
    %v65 = vld [vmem:[#allocation6 + $0x10] sm:$0xf]
    %v66 = vld [vmem:[#allocation6 + $0x14] sm:$0xf]
    %v67 = vld [vmem:[#allocation6 + $0x18] sm:$0xf]
    %v68 = vld [vmem:[#allocation6 + $0x1c] sm:$0xf]
    %v69 = vld [vmem:[#allocation6 + $0x20] sm:$0xf]
    %v70 = vld [vmem:[#allocation6 + $0x24] sm:$0xf]
    %v71 = vld [vmem:[#allocation6 + $0x28] sm:$0xf]
    %v72 = vld [vmem:[#allocation6 + $0x2c] sm:$0xf]
    %v73 = vld [vmem:[#allocation6 + $0x30] sm:$0xf]
    %v74 = vld [vmem:[#allocation6 + $0x34] sm:$0xf]
    %v75 = vld [vmem:[#allocation6 + $0x38] sm:$0xf]
    %v76 = vld [vmem:[#allocation6 + $0x3c] sm:$0xf]
    %v79 = vunpack.c.l.b16 %v59
    %v80 = vunpack.c.l.b16 %v60
    %v81 = vpack.c.b16 %v80, %v79
    %v99 = vunpack.c.l.b16 %v61
    %v100 = vunpack.c.l.b16 %v62
    %v101 = vunpack.c.l.b16 %v63
    %v102 = vunpack.c.l.b16 %v64
    %v103 = vunpack.c.l.b16 %v65
    %v104 = vunpack.c.l.b16 %v66
    %v105 = vunpack.c.l.b16 %v67
    %v106 = vunpack.c.l.b16 %v68
    %v107 = vunpack.c.l.b16 %v69
    %v108 = vunpack.c.l.b16 %v70
    %v109 = vunpack.c.l.b16 %v71
    %v110 = vunpack.c.l.b16 %v72
    %v111 = vunpack.c.l.b16 %v73
    %v112 = vunpack.c.l.b16 %v74
    %v113 = vunpack.c.l.b16 %v75
    %v114 = vunpack.c.l.b16 %v76
    %v115 = vpack.c.b16 %v100, %v99
    %v116 = vpack.c.b16 %v102, %v101
    %v117 = vpack.c.b16 %v104, %v103
    %v118 = vpack.c.b16 %v106, %v105
    %v119 = vpack.c.b16 %v108, %v107
    %v120 = vpack.c.b16 %v110, %v109
    %v121 = vpack.c.b16 %v112, %v111
    %v122 = vpack.c.b16 %v114, %v113
    %131 = vmatpush.bf16.msra.mxu0 %v122
    %132 = vmatpush.bf16.msra.mxu0 %v121
    %133 = vmatpush.bf16.msra.mxu0 %v120
    %134 = vmatpush.bf16.msra.mxu0 %v119
    %135 = vmatpush.bf16.msra.mxu0 %v118
    %136 = vmatpush.bf16.msra.mxu0 %v117
    %137 = vmatpush.bf16.msra.mxu0 %v116
    %138 = vmatpush.bf16.msra.mxu0 %v115
    %139 = vmatmul.bf16.gmra.mxu0 %v81
    %v140 = vpop.f32.mrf.mxu0
    %v141 = vadd.f32 0.0, %v140
    %v142 = vpop.f32.mrf.mxu0
    %v143 = vadd.f32 0.0, %v142
    %144 = vdwg.mxu0
    %v145 = vadd.f32 %v57, %v141
    %v146 = vadd.f32 %v58, %v143
    %147 = vst [vmem:[#allocation2] sm:$0xff] %v145
    %148 = vst [vmem:[#allocation2 + $0x8] sm:$0xff] %v146
    // Predicated region
    $region26: #{tpu_custom_call.1} parent=1 // pred_check
      %p149 = pneg %p47
    $region27: #{tpu_custom_call.1} parent=1 // pred_check_branch
      %151 = sbr.rel (%p149) target = $region29
    $region28: #{tpu_custom_call.1} parent=1 // pred_region
      %v152 = vld [vmem:[#allocation2] sm:$0xff]
      %v153 = vld [vmem:[#allocation2 + $0x8] sm:$0xff]
      %154 = vst [vmem:[#allocation8] sm:$0xff] %v152
      %155 = vst [vmem:[#allocation8 + $0x8] sm:$0xff] %v153
    $region29: #{tpu_custom_call.1} parent=1 // pred_fallthru
      _
    // Predicated region
    $region30: #{tpu_custom_call.1} parent=1 // pred_check
      _
    $region31: #{tpu_custom_call.1} parent=1 // pred_check_branch
      %157 = sbr.rel (0) target = $region33
    $region32: #{tpu_custom_call.1} parent=1 // pred_region
      %159 = vsyncadd [#allocation5], 0
      %s160 = sshll.u32 [#allocation8], 4
      %s161 = int_to_ptr.vmem [resolvable:$true] %s160
      %s162 = sshll.u32 %s3, 4
      %s163 = int_to_ptr.hbm [resolvable:$true] %s162
      %168 = dma.vmem_to_hbm [thread:$0]  %s161, 256, %s163, [#allocation5], 128, 128, 8
    $region33: #{tpu_custom_call.1} parent=1 // pred_fallthru
      _
    // Predicated region
    $region34: #{tpu_custom_call.1} parent=1 // pred_check
      _
    $region35: #{tpu_custom_call.1} parent=1 // pred_check_branch
      %170 = sbr.rel (0) target = $region37
    $region36: #{tpu_custom_call.1} parent=1 // pred_region
      %172 = dma.done [#allocation5], 256
    $region37: #{tpu_custom_call.1} parent=1 // pred_fallthru
      _
    %173 = vsyncpa [#allocation4], 1
    %174 = vsyncpa [#allocation7], 1
    %175 = vsyncpa [#allocation5], 1

</llo_original>
